<compile_context>
chip_gen: v6e
topology: v6e:2x2x1
jax: 0.10.0
libtpu: 0.0.40
codegen_flags: <defaults>
</compile_context>

<pallas_src>
import functools
import math

import jax
import jax.numpy as jnp
from jax import lax
from jax.experimental import pallas as pl
from jax.experimental.pallas import tpu as pltpu


def _label_smoothing_kernel(x_ref, tgt_ref, out_ref, *,
                            n_rows, block_rows, padding_idx,
                            confidence, smooth_val, const_term, ragged_rows):
    x = x_ref[...].astype(jnp.float32)               # (bm, V) log-probs
    bm, V = x.shape
    tgt = tgt_ref[...]                               # (bm, 1) int32

    col = lax.broadcasted_iota(jnp.int32, (bm, V), 1)

    # x[r, tgt_r] extracted as a masked lane reduction (XLU slot).
    sum_tgt = jnp.sum(jnp.where(col == tgt, x, 0.0), axis=-1, keepdims=True)
    # Sum of x over all non-padding columns.
    sum_valid = jnp.sum(jnp.where(col == padding_idx, 0.0, x),
                        axis=-1, keepdims=True)

    # Closed form of KL(true_dist || exp(x)) summed over one live row.
    row_loss = (jnp.float32(const_term)
                - jnp.float32(confidence - smooth_val) * sum_tgt
                - jnp.float32(smooth_val) * sum_valid)

    # Rows whose target is padding_idx contribute 0; so do out-of-range rows
    # of a ragged final block (their x/target values are undefined garbage).
    dead = tgt == padding_idx
    if ragged_rows:
        row = (lax.broadcasted_iota(jnp.int32, (bm, 1), 0)
               + pl.program_id(0) * block_rows)
        dead = dead | (row >= n_rows)
    row_loss = jnp.where(dead, 0.0, row_loss)

    # One lane-dense (8,128) partial-sum block per grid step.
    out_ref[...] = jnp.full(out_ref.shape, jnp.sum(row_loss), jnp.float32)


def label_smoothing_loss(x, target, *, size, padding_idx, smoothing,
                         block_rows=1024):
    """x: (N, size) float32/bf16 log-probs, target: (N,) int -> scalar f32 loss.

    Matches torch.nn.KLDivLoss(reduction='sum')(x, true_dist) with the
    LabelSmoothing true_dist construction from the reference module.
    Assumes 0 <= target < size and 0 <= padding_idx < size (as the module does).
    """
    N, V = x.shape
    assert V == size

    itemsize = jnp.dtype(x.dtype).itemsize

    # Generation-aware VMEM budget (64 MiB/TC on v7x, 128 MiB on v5e/v6e).
    try:
        vmem_cap = int(pltpu.get_tpu_info().vmem_capacity_bytes)
    except Exception:  # pragma: no cover - conservative fallback
        vmem_cap = 64 << 20
    budget = (vmem_cap * 3) // 5   # headroom for pipeline + temporaries

    # Per-row cost: double-buffered x tile + f32 in-kernel temporaries.
    # (For extreme vocabularies the 8-row minimum may still exceed the budget;
    #  typical transformer vocabs fit comfortably.)
    per_row = V * (2 * itemsize + 12) + 1024
    fit_rows = max(8, (budget // per_row) // 8 * 8)
    cap_rows = ((N + 7) // 8) * 8
    block_rows = min(int(block_rows), fit_rows, cap_rows)
    block_rows = max(8, (block_rows // 8) * 8)

    num_blocks = pl.cdiv(N, block_rows)
    ragged_rows = (N % block_rows) != 0

    confidence = 1.0 - float(smoothing)
    smooth_val = float(smoothing) / (size - 2)
    conf_logconf = confidence * math.log(confidence) if confidence > 0 else 0.0
    smooth_logsmooth = (smooth_val * math.log(smooth_val)
                        if smooth_val > 0 else 0.0)
    const_term = conf_logconf + (size - 2) * smooth_logsmooth

    tgt2d = target.astype(jnp.int32).reshape(N, 1)

    kernel = functools.partial(
        _label_smoothing_kernel,
        n_rows=N, block_rows=block_rows, padding_idx=int(padding_idx),
        confidence=confidence, smooth_val=smooth_val,
        const_term=const_term, ragged_rows=ragged_rows)

    vmem_limit = int(min(max(block_rows * per_row + (2 << 20), 16 << 20),
                         (vmem_cap * 3) // 4))

    partials = pl.pallas_call(
        kernel,
        out_shape=jax.ShapeDtypeStruct((num_blocks * 8, 128), jnp.float32),
        grid=(num_blocks,),
        in_specs=[
            pl.BlockSpec((block_rows, V), lambda i: (i, 0)),
            pl.BlockSpec((block_rows, 1), lambda i: (i, 0)),
        ],
        out_specs=pl.BlockSpec((8, 128), lambda i: (i, 0)),
        compiler_params=pltpu.CompilerParams(
            dimension_semantics=("parallel",),
            vmem_limit_bytes=vmem_limit),
    )(x, tgt2d)

    # One partial per row block (replicated across its (8,128) output block).
    return jnp.sum(partials[::8, 0])


def _reference_loss(x, target, *, size, padding_idx, smoothing):
    """Plain-JAX mirror of the PyTorch forward, for verification."""
    N, V = x.shape
    confidence = 1.0 - smoothing
    smooth_val = smoothing / (size - 2)
    col = jnp.arange(V)[None, :]
    tgt = target[:, None]
    td = jnp.where(col == tgt, confidence, smooth_val)
    td = jnp.where(col == padding_idx, 0.0, td)
    td = jnp.where(tgt == padding_idx, 0.0, td)
    safe = jnp.where(td > 0, td, 1.0)
    return jnp.sum(jnp.where(td > 0, td * (jnp.log(safe) - x), 0.0))


if __name__ == "__main__":
    SIZE = 32          # vocab ("size"); kept as a single full-extent block
    N = 16             # rows (batch * seq flattened)
    PADDING_IDX = 0
    SMOOTHING = 0.1

    key = jax.random.PRNGKey(0)
    k_logits, k_tgt = jax.random.split(key)

    # x must be log-probabilities (as KLDivLoss expects).
    logits = jax.random.normal(k_logits, (N, SIZE), dtype=jnp.float32)
    x = jax.nn.log_softmax(logits, axis=-1)
    target = jax.random.randint(k_tgt, (N,), 0, SIZE, dtype=jnp.int32)
    target = target.at[3].set(PADDING_IDX)   # exercise the padding-row path

    loss = label_smoothing_loss(
        x, target, size=SIZE, padding_idx=PADDING_IDX, smoothing=SMOOTHING)
    loss = jax.block_until_ready(loss)
    ref = _reference_loss(
        x, target, size=SIZE, padding_idx=PADDING_IDX, smoothing=SMOOTHING)
    assert jnp.allclose(loss, ref, rtol=1e-5, atol=1e-3), (loss, ref)

    # Ragged row count (exercises the in-kernel global_row >= N masking).
    loss2 = label_smoothing_loss(
        x[:13], target[:13], size=SIZE, padding_idx=PADDING_IDX,
        smoothing=SMOOTHING)
    loss2 = jax.block_until_ready(loss2)
    ref2 = _reference_loss(
        x[:13], target[:13], size=SIZE, padding_idx=PADDING_IDX,
        smoothing=SMOOTHING)
    assert jnp.allclose(loss2, ref2, rtol=1e-5, atol=1e-3), (loss2, ref2)

    print("KERNEL_OK")
</pallas_src>

<mosaic_0001>
module attributes {stable_mosaic.version = 11 : i64} {
  func.func @_label_smoothing_kernel(%arg0: i32, %arg1: memref<16x32xf32, #tpu.memory_space<vmem>>, %arg2: memref<16x1xi32, #tpu.memory_space<vmem>>, %arg3: memref<8x128xf32, #tpu.memory_space<vmem>>) attributes {dimension_semantics = [#tpu.dimension_semantics<parallel>], iteration_bounds = array<i64: 1>, scalar_prefetch = 0 : i64, scratch_operands = 0 : i64, tpu.core_type = #tpu.core_type<tc>, window_params = [{transform_indices = @transform_0, window_bounds = array<i64: 16, 32>}, {transform_indices = @transform_1, window_bounds = array<i64: 16, 1>}, {transform_indices = @transform_2, window_bounds = array<i64: 8, 128>}]} {
    %c0 = arith.constant 0 : index
    %c0_0 = arith.constant 0 : index
    %0 = vector.load %arg1[%c0, %c0_0] : memref<16x32xf32, #tpu.memory_space<vmem>>, vector<16x32xf32>
    %c0_1 = arith.constant 0 : index
    %c0_2 = arith.constant 0 : index
    %1 = vector.load %arg2[%c0_1, %c0_2] : memref<16x1xi32, #tpu.memory_space<vmem>>, vector<16x1xi32>
    %2 = tpu.iota {dimensions = array<i32: 1>} : vector<16x32xi32>
    %3 = vector.broadcast %1 : vector<16x1xi32> to vector<16x32xi32>
    %4 = arith.cmpi eq, %2, %3 : vector<16x32xi32>
    %cst = arith.constant 0.000000e+00 : f32
    %5 = vector.broadcast %cst : f32 to vector<16x32xf32>
    %6 = arith.select %4, %0, %5 : vector<16x32xi1>, vector<16x32xf32>
    %cst_3 = arith.constant dense<0.000000e+00> : vector<16xf32>
    %7 = vector.multi_reduction <add>, %6, %cst_3 [1] : vector<16x32xf32> to vector<16xf32>
    %8 = vector.shape_cast %7 : vector<16xf32> to vector<16x1xf32>
    %c0_i32 = arith.constant 0 : i32
    %9 = vector.broadcast %c0_i32 : i32 to vector<16x32xi32>
    %10 = arith.cmpi eq, %2, %9 : vector<16x32xi32>
    %cst_4 = arith.constant 0.000000e+00 : f32
    %11 = vector.broadcast %cst_4 : f32 to vector<16x32xf32>
    %12 = arith.select %10, %11, %0 : vector<16x32xi1>, vector<16x32xf32>
    %cst_5 = arith.constant dense<0.000000e+00> : vector<16xf32>
    %13 = vector.multi_reduction <add>, %12, %cst_5 [1] : vector<16x32xf32> to vector<16xf32>
    %14 = vector.shape_cast %13 : vector<16xf32> to vector<16x1xf32>
    %cst_6 = arith.constant 0.896666646 : f32
    %15 = vector.broadcast %cst_6 : f32 to vector<16x1xf32>
    %16 = arith.mulf %15, %8 : vector<16x1xf32>
    %cst_7 = arith.constant -0.665202737 : f32
    %17 = vector.broadcast %cst_7 : f32 to vector<16x1xf32>
    %18 = arith.subf %17, %16 : vector<16x1xf32>
    %cst_8 = arith.constant 0.00333333341 : f32
    %19 = vector.broadcast %cst_8 : f32 to vector<16x1xf32>
    %20 = arith.mulf %19, %14 : vector<16x1xf32>
    %21 = arith.subf %18, %20 : vector<16x1xf32>
    %c0_i32_9 = arith.constant 0 : i32
    %22 = vector.broadcast %c0_i32_9 : i32 to vector<16x1xi32>
    %23 = arith.cmpi eq, %1, %22 : vector<16x1xi32>
    %cst_10 = arith.constant 0.000000e+00 : f32
    %24 = vector.broadcast %cst_10 : f32 to vector<16x1xf32>
    %25 = arith.select %23, %24, %21 : vector<16x1xi1>, vector<16x1xf32>
    %26 = vector.shape_cast %25 : vector<16x1xf32> to vector<1x16x1xf32>
    %cst_11 = arith.constant dense<0.000000e+00> : vector<1xf32>
    %27 = vector.multi_reduction <add>, %26, %cst_11 [1, 2] : vector<1x16x1xf32> to vector<1xf32>
    %28 = vector.shape_cast %27 : vector<1xf32> to vector<1x1x1xf32>
    %29 = vector.extract %28[0, 0, 0] : f32 from vector<1x1x1xf32>
    %30 = vector.broadcast %29 : f32 to vector<8x128xf32>
    %c0_12 = arith.constant 0 : index
    %c0_13 = arith.constant 0 : index
    %31 = vector.load %arg3[%c0_12, %c0_13] : memref<8x128xf32, #tpu.memory_space<vmem>>, vector<8x128xf32>
    tpu.vector_store %arg3[%c0_12, %c0_13], %30 {strides = array<i32>} : memref<8x128xf32, #tpu.memory_space<vmem>>, vector<8x128xf32>,
    return
  }
  func.func @transform_0(%arg0: i32) -> (i32, i32) {
    %c0_i32 = arith.constant 0 : i32
    %c0_i32_0 = arith.constant 0 : i32
    return %arg0, %c0_i32 : i32, i32
  }
  func.func @transform_1(%arg0: i32) -> (i32, i32) {
    %c0_i32 = arith.constant 0 : i32
    %c0_i32_0 = arith.constant 0 : i32
    return %arg0, %c0_i32 : i32, i32
  }
  func.func @transform_2(%arg0: i32) -> (i32, i32) {
    %c0_i32 = arith.constant 0 : i32
    %c0_i32_0 = arith.constant 0 : i32
    return %arg0, %c0_i32 : i32, i32
  }
}

</mosaic_0001>

<llo_original>
// kernel: tpu_custom_call.1
$region0: #{tpu_custom_call.1}
  #allocation0 [shape = 'u32[]', space=smem, size = 0x4, offset = 0x4, fixed_abs, tag = 'smem constant byte address 0x4 - core index']
  #allocation1 [shape = 'u32[144,128]{1,0:T(1,128)}', space=vmem, size = 0x12000, scoped, tag = 'internal scratch']
  %s0 = inlined_call_operand.vmem [shape: f32[16,32], index: 0, kind: input, shape index: {}]
  %s1 = inlined_call_operand.vmem [shape: s32[16,1], index: 1, kind: input, shape index: {}]
  %s2 = inlined_call_operand.hbm [shape: f32[8,128], index: 2, kind: output, shape index: {}]
  %s3 = sld [smem:[#allocation0]]
  $region18: #{tpu_custom_call.1} parent=0
    _
  %s5 = ssub.s32 1, %s3
  %s6 = scalar_select 0, %s5, %s3
  $region1: #{tpu_custom_call.1} parent=0
    #allocation2 [shape = 'u8[4096]{0}', space=vmem, size = 0x1000, scoped, tag = 'output window, operand 0, single buffered']
    #allocation3 [shape = 's32[1]{0}', space=sflag, size = 0x4, scoped, tag = 'scoped memory for tpu_custom_call.1']
    %7 = vsyncpa [#allocation3], 0
    // Predicated region
    $region2: #{tpu_custom_call.1} parent=1 // pred_check
      _
    $region3: #{tpu_custom_call.1} parent=1 // pred_check_branch
      %9 = sbr.rel (0) target = $region5
    $region4: #{tpu_custom_call.1} parent=1 // pred_region
      _
    $region5: #{tpu_custom_call.1} parent=1 // pred_fallthru
      _
    // Predicated region
    $region6: #{tpu_custom_call.1} parent=1 // pred_check
      _
    $region7: #{tpu_custom_call.1} parent=1 // pred_check_branch
      %11 = sbr.rel (0) target = $region9
    $region8: #{tpu_custom_call.1} parent=1 // pred_region
      _
    $region9: #{tpu_custom_call.1} parent=1 // pred_fallthru
      _
    %v12 = vld [vmem:[%s0] sm:$0xff]
    %v13 = vld [vmem:[%s0 + $0x8] sm:$0xff]
    %v14 = vld [vmem:[%s1] sm:$0xff]
    %v15 = vld [vmem:[%s1 + $0x8] sm:$0xff]
    %v16 = vlaneseq
    %v17 = vand.u32 %v16, 127
    %18 = vset.pattern.permute.xlu0 0
    %19 = vperm.xlu0 %18, %v14
    %v20 = vpop.permute.xlu0 %19
    %21 = vset.pattern.permute.xlu0 0
    %22 = vperm.xlu0 %21, %v15
    %v23 = vpop.permute.xlu0 %22
    %vm24 = vcmp.eq.s32.totalorder %v17, %v20
    %vm25 = vcmp.eq.s32.totalorder %v17, %v23
    %v26 = vsel %vm24, %v12, 0.0
    %v27 = vsel %vm25, %v13, 0.0
    %vm28 = vcmask 261120
    %v29 = vsel %vm28, %v26, 0.0
    %30 = vadd.xlane.f32.xlu0 %v29
    %v31 = vpop.xlane.xlu0 %30
    %v32 = vsel %vm28, %v27, 0.0
    %33 = vadd.xlane.f32.xlu0 %v32
    %v34 = vpop.xlane.xlu0 %33
    %vm35 = vcmp.eq.s32.totalorder %v17, 0
    %v36 = vsel %vm35, 0.0, %v12
    %v37 = vsel %vm35, 0.0, %v13
    %v38 = vsel %vm28, %v36, 0.0
    %39 = vadd.xlane.f32.xlu0 %v38
    %v40 = vpop.xlane.xlu0 %39
    %v41 = vsel %vm28, %v37, 0.0
    %42 = vadd.xlane.f32.xlu0 %v41
    %v43 = vpop.xlane.xlu0 %42
    %v44 = vmul.f32 %v31, 0.89666665
    %v45 = vmul.f32 %v34, 0.89666665
    %v46 = vsub.f32 -0.66520274, %v44
    %v47 = vsub.f32 -0.66520274, %v45
    %v48 = vmul.f32 %v40, 0.0033333334
    %v49 = vmul.f32 %v43, 0.0033333334
    %v50 = vsub.f32 %v46, %v48
    %v51 = vsub.f32 %v47, %v49
    %vm52 = vcmp.eq.s32.totalorder %v14, 0
    %vm53 = vcmp.eq.s32.totalorder %v15, 0
    %v54 = vsel %vm52, 0.0, %v50
    %v55 = vsel %vm53, 0.0, %v51
    %vm56 = vcmask 7168
    %v57 = vsel %vm56, %v54, 0.0
    %v58 = vsel %vm56, %v55, 0.0
    %v59 = vadd.f32 %v57, %v58
    %60 = vadd.xlane.f32.xlu0 %v59
    %v61 = vpop.xlane.xlu0 %60
    %v62 = vrot.slane %v61, 4
    %v63 = vadd.f32 %v61, %v62
    %v64 = vrot.slane %v63, 2
    %v65 = vadd.f32 %v63, %v64
    %v66 = vrot.slane %v65, 1
    %v67 = vadd.f32 %v65, %v66
    %s68 = vtos %v67
    %v69 = vstv %s68
    %70 = vst [vmem:[#allocation2] sm:$0xff] %v69
    // Predicated region
    $region10: #{tpu_custom_call.1} parent=1 // pred_check
      _
    $region11: #{tpu_custom_call.1} parent=1 // pred_check_branch
      %72 = sbr.rel (0) target = $region13
    $region12: #{tpu_custom_call.1} parent=1 // pred_region
      %s74 = ssub.s32 128, 128
      %75 = vsyncadd [#allocation3], %s74
      %s77 = sshll.u32 [#allocation2], 4
      %s78 = int_to_ptr.vmem [resolvable:$true] %s77
      %80 = dma.vmem_to_hbm [thread:$0]  %s78, 128, %s2, [#allocation3]
    $region13: #{tpu_custom_call.1} parent=1 // pred_fallthru
      _
    // Predicated region
    $region14: #{tpu_custom_call.1} parent=1 // pred_check
      _
    $region15: #{tpu_custom_call.1} parent=1 // pred_check_branch
      %82 = sbr.rel (0) target = $region17
    $region16: #{tpu_custom_call.1} parent=1 // pred_region
      %83 = dma.done [#allocation3], 128
    $region17: #{tpu_custom_call.1} parent=1 // pred_fallthru
      _
    %84 = vsyncpa [#allocation3], 1

</llo_original>
